<compile_context>
chip_gen: v7x
topology: tpu7x:2x2x1
jax: 0.10.0
libtpu: 0.0.40
codegen_flags: <defaults>
</compile_context>

<pallas_src>
import functools

import jax
import jax.numpy as jnp
from jax.experimental import pallas as pl
from jax.experimental.pallas import tpu as pltpu


def _round_up(x, m):
    return ((x + m - 1) // m) * m


def _vmem_capacity_bytes():
    """Per-core VMEM capacity; conservative 64 MiB (v7x) if unknown."""
    try:
        return int(pltpu.get_tpu_info().vmem_capacity_bytes)
    except Exception:
        return 64 * (1 << 20)


def highway_kernel(x_ref, w_ref, b_ref, o_ref, *, num_layers, hp):
    """One row-tile of the highway stack.

    x_ref : (TM, Hp)       bf16 input rows (zero in padded lanes)
    w_ref : (L, Hp, 2*Hp)  bf16 fused [transform | gate] weights, (in, out)
    b_ref : (L, 1, 2*Hp)   f32 fused biases
    o_ref : (TM, Hp)       f32 output rows
    """
    x_bf = x_ref[...]                      # bf16 -> feeds layer-0 MXU directly
    x = x_bf.astype(jnp.float32)           # residual carried in f32
    # num_layers is a small static constant -> unrolled Python loop, static slices.
    for l in range(num_layers):
        w = w_ref[l]                       # (Hp, 2Hp) bf16
        b = b_ref[l]                       # (1, 2Hp)  f32
        lhs = x_bf if l == 0 else x.astype(jnp.bfloat16)
        # Single fused MXU GEMM per layer: bf16 operands, f32 accumulation.
        y = jnp.dot(lhs, w, preferred_element_type=jnp.float32) + b
        t = jnp.maximum(y[:, :hp], 0.0)                 # relu(transform(x))
        # sigmoid via tanh form: keeps the transcendental on the EUP slot and
        # avoids the multi-op VPU divide that 1/(1+e^-x) lowers to.
        g = 0.5 * (jnp.tanh(0.5 * y[:, hp:]) + 1.0)     # == sigmoid(gate(x))
        # g*t + (1-g)*x == x + g*(t - x)  (one fewer VPU mul/sub).
        # Padded-lane invariant: weights/biases are ZERO-padded, so in padded
        # lanes t = 0, g = 0.5 and x stays exactly 0 through every layer.
        x = x + g * (t - x)
    o_ref[...] = x.astype(o_ref.dtype)


def prepare_params(wt, bt, wg, bg):
    """One-time parameter packing (do this at load time, NOT per forward call).

    wt/wg: (L, H, H) in PyTorch nn.Linear (out, in) layout. bt/bg: (L, H).
    Returns:
      w_cat: (L, Hp, 2*Hp) bf16 -- (in, out) layout, [transform | gate] fused
      b_cat: (L, 1, 2*Hp)  f32
    NOTE: padding MUST be zero -- the kernel relies on zero-padded weight
    rows/cols and biases to keep padded lanes identically zero.
    """
    L, H, _ = wt.shape
    Hp = _round_up(H, 128)

    def pack_w(w):
        w = jnp.transpose(w, (0, 2, 1))                         # (out,in)->(in,out)
        return jnp.pad(w, ((0, 0), (0, Hp - H), (0, Hp - H)))   # zero pad

    def pack_b(b):
        return jnp.pad(b, ((0, 0), (0, Hp - H)))                # zero pad

    w_cat = jnp.concatenate([pack_w(wt), pack_w(wg)], axis=-1).astype(jnp.bfloat16)
    b_cat = jnp.concatenate([pack_b(bt), pack_b(bg)], axis=-1)[:, None, :]
    return w_cat, b_cat.astype(jnp.float32)


def highway_encoder(x, w_cat, b_cat, *, tm=1024):
    """x: (B, S, H) f32. w_cat/b_cat: outputs of prepare_params (done once)."""
    B, S, H = x.shape
    L, Hp, Hp2 = w_cat.shape
    assert Hp2 == 2 * Hp and Hp % 128 == 0
    M = B * S

    # ---- generation-aware VMEM budget (7/8 of physical per-core VMEM) ------
    vmem_cap = _vmem_capacity_bytes()
    vmem_budget = (vmem_cap * 7) // 8      # 56 MiB on v7x, 112 MiB on v5e/v6e

    # ---- pick the row tile --------------------------------------------------
    rows = _round_up(M, 8)
    tm_eff = max(8, min(_round_up(tm, 8), rows))
    # Keep >= 2 grid steps per TensorCore (>= 4 total) when there is enough
    # work so BlockSpec double-buffering can hide the x/out DMAs.
    min_steps = 4
    if rows // tm_eff < min_steps and rows >= min_steps * 8:
        tm_eff = max(8, _round_up(pl.cdiv(rows, min_steps), 8))

    def vmem_est(t):
        w_bytes = 1 * w_cat.size * jnp.dtype(w_cat.dtype).itemsize  # single-buffered
        b_bytes = 1 * b_cat.size * 4
        x_bytes = 2 * t * Hp * 2                      # bf16 input, double-buffered
        o_bytes = 2 * t * Hp * 4                      # f32 output, double-buffered
        mid_bytes = 3 * t * (2 * Hp) * 4 + t * Hp * 4  # y/t/g spills + f32 residual
        return w_bytes + b_bytes + x_bytes + o_bytes + mid_bytes

    while vmem_est(tm_eff) > vmem_budget and tm_eff > 8:
        tm_eff = max(8, _round_up(tm_eff // 2, 8))

    # ---- avoid the wrapper-side pad (an extra HBM round trip) if possible --
    no_pad = (Hp == H) and (M % tm_eff == 0)
    if no_pad:
        x2 = x.reshape(M, H).astype(jnp.bfloat16)
        rows_total = M
    else:
        Mp = _round_up(M, tm_eff)
        x2 = jnp.pad(x.reshape(M, H).astype(jnp.bfloat16),
                     ((0, Mp - M), (0, Hp - H)))       # cast first -> pad writes bf16
        rows_total = Mp

    grid = (rows_total // tm_eff,)
    kernel = functools.partial(highway_kernel, num_layers=L, hp=Hp)

    def run(single_buffer_weights):
        if single_buffer_weights:
            # Grid-invariant blocks: single-buffer to halve their VMEM residency.
            w_spec = pl.BlockSpec((L, Hp, 2 * Hp), lambda i: (0, 0, 0),
                                  pipeline_mode=pl.Buffered(1))
            b_spec = pl.BlockSpec((L, 1, 2 * Hp), lambda i: (0, 0, 0),
                                  pipeline_mode=pl.Buffered(1))
        else:
            w_spec = pl.BlockSpec((L, Hp, 2 * Hp), lambda i: (0, 0, 0))
            b_spec = pl.BlockSpec((L, 1, 2 * Hp), lambda i: (0, 0, 0))
        return pl.pallas_call(
            kernel,
            out_shape=jax.ShapeDtypeStruct((rows_total, Hp), x.dtype),
            grid_spec=pltpu.PrefetchScalarGridSpec(
                num_scalar_prefetch=0,
                grid=grid,
                in_specs=[
                    pl.BlockSpec((tm_eff, Hp), lambda i: (i, 0)),   # x row tile (bf16)
                    w_spec,                                         # fused weights
                    b_spec,                                         # fused biases
                ],
                out_specs=pl.BlockSpec((tm_eff, Hp), lambda i: (i, 0)),  # lane-dense
            ),
            compiler_params=pltpu.CompilerParams(
                dimension_semantics=("parallel",),
                vmem_limit_bytes=int(vmem_budget),
            ),
        )(x2, w_cat, b_cat)

    try:
        out2 = run(True)
    except Exception:
        # Fallback for jax versions that reject Buffered(1) on grid-invariant
        # blocks: default double-buffering (correct, slightly more VMEM).
        out2 = run(False)

    if no_pad:
        return out2.reshape(B, S, H)
    return out2[:M, :H].reshape(B, S, H)


def highway_ref(x, wt, bt, wg, bg):
    """Pure-JAX reference matching the PyTorch forward (f32)."""
    L = wt.shape[0]
    for l in range(L):
        g = jax.nn.sigmoid(jnp.einsum("bsh,oh->bso", x, wg[l]) + bg[l])
        t = jax.nn.relu(jnp.einsum("bsh,oh->bso", x, wt[l]) + bt[l])
        x = g * t + (1.0 - g) * x
    return x


def init_params(key, num_layers, hidden_size):
    """Deterministic nn.Linear-style init: U(-1/sqrt(H), 1/sqrt(H))."""
    bound = 1.0 / (hidden_size ** 0.5)
    ks = jax.random.split(key, 4)
    wt = jax.random.uniform(ks[0], (num_layers, hidden_size, hidden_size),
                            jnp.float32, -bound, bound)
    bt = jax.random.uniform(ks[1], (num_layers, hidden_size),
                            jnp.float32, -bound, bound)
    wg = jax.random.uniform(ks[2], (num_layers, hidden_size, hidden_size),
                            jnp.float32, -bound, bound)
    bg = jax.random.uniform(ks[3], (num_layers, hidden_size),
                            jnp.float32, -bound, bound)
    return wt, bt, wg, bg


if __name__ == "__main__":
    num_layers = 2
    batch, seq, hidden = 2, 8, 32
    # NOTE: this demo shape pads H 32->128 (correctness check only); realistic
    # benchmarking should use H that is a multiple of 128 and M >= 4*TM.

    key = jax.random.PRNGKey(0)
    kx, kp = jax.random.split(key)
    x = jax.random.normal(kx, (batch, seq, hidden), jnp.float32)
    wt, bt, wg, bg = init_params(kp, num_layers, hidden)

    # one-time packing (transpose + fuse + bf16 cast) — amortized across calls
    w_cat, b_cat = prepare_params(wt, bt, wg, bg)

    out = highway_encoder(x, w_cat, b_cat)
    out = jax.block_until_ready(out)

    ref = highway_ref(x, wt, bt, wg, bg)
    assert out.shape == (batch, seq, hidden)
    # bf16 weights + bf16 activation streaming => loosened tolerance vs the
    # pure-f32 reference; error grows with L and H (use f32 weights for very
    # deep stacks if tighter accuracy is needed).
    assert jnp.allclose(out, ref, atol=3e-2, rtol=3e-2), "mismatch vs reference"

    print("KERNEL_OK")
</pallas_src>

<mosaic_0001>
module attributes {stable_mosaic.version = 11 : i64} {
  func.func @highway_kernel(%arg0: i32, %arg1: memref<16x128xbf16, #tpu.memory_space<vmem>>, %arg2: memref<2x128x256xbf16, #tpu.memory_space<vmem>>, %arg3: memref<2x1x256xf32, #tpu.memory_space<vmem>>, %arg4: memref<16x128xf32, #tpu.memory_space<vmem>>) attributes {dimension_semantics = [#tpu.dimension_semantics<parallel>], iteration_bounds = array<i64: 1>, scalar_prefetch = 0 : i64, scratch_operands = 0 : i64, tpu.core_type = #tpu.core_type<tc>, window_params = [{transform_indices = @transform_0, window_bounds = array<i64: 16, 128>}, {pipeline_mode = #tpu.pipeline_mode<synchronous>, transform_indices = @transform_1, window_bounds = array<i64: 2, 128, 256>}, {pipeline_mode = #tpu.pipeline_mode<synchronous>, transform_indices = @transform_2, window_bounds = array<i64: 2, 1, 256>}, {transform_indices = @transform_3, window_bounds = array<i64: 16, 128>}]} {
    %c0 = arith.constant 0 : index
    %c0_0 = arith.constant 0 : index
    %0 = vector.load %arg1[%c0, %c0_0] : memref<16x128xbf16, #tpu.memory_space<vmem>>, vector<16x128xbf16>
    %1 = arith.extf %0 : vector<16x128xbf16> to vector<16x128xf32>
    %c0_1 = arith.constant 0 : index
    %c0_2 = arith.constant 0 : index
    %c0_3 = arith.constant 0 : index
    %2 = vector.load %arg2[%c0_1, %c0_2, %c0_3] : memref<2x128x256xbf16, #tpu.memory_space<vmem>>, vector<1x128x256xbf16>
    %3 = vector.shape_cast %2 : vector<1x128x256xbf16> to vector<128x256xbf16>
    %c0_4 = arith.constant 0 : index
    %c0_5 = arith.constant 0 : index
    %c0_6 = arith.constant 0 : index
    %4 = vector.load %arg3[%c0_4, %c0_5, %c0_6] : memref<2x1x256xf32, #tpu.memory_space<vmem>>, vector<1x1x256xf32>
    %5 = vector.shape_cast %4 : vector<1x1x256xf32> to vector<1x256xf32>
    %cst = arith.constant dense<0.000000e+00> : vector<16x256xf32>
    %6 = tpu.matmul %0, %3, %cst {dimension_numbers = #tpu.dot_dimension_numbers<[1], [0], [0], [1], [0, 0, 1, 1], [], []>} : vector<16x128xbf16>, vector<128x256xbf16>, vector<16x256xf32> -> vector<16x256xf32>
    %7 = vector.broadcast %5 : vector<1x256xf32> to vector<16x256xf32>
    %8 = arith.addf %6, %7 : vector<16x256xf32>
    %9 = vector.extract_strided_slice %8 {offsets = [0, 0], sizes = [16, 128], strides = [1, 1]} : vector<16x256xf32> to vector<16x128xf32>
    %cst_7 = arith.constant 0.000000e+00 : f32
    %10 = vector.broadcast %cst_7 : f32 to vector<16x128xf32>
    %11 = arith.maximumf %9, %10 : vector<16x128xf32>
    %12 = vector.extract_strided_slice %8 {offsets = [0, 128], sizes = [16, 128], strides = [1, 1]} : vector<16x256xf32> to vector<16x128xf32>
    %cst_8 = arith.constant 5.000000e-01 : f32
    %13 = vector.broadcast %cst_8 : f32 to vector<16x128xf32>
    %14 = arith.mulf %13, %12 : vector<16x128xf32>
    %15 = math.tanh %14 : vector<16x128xf32>
    %cst_9 = arith.constant 1.000000e+00 : f32
    %16 = vector.broadcast %cst_9 : f32 to vector<16x128xf32>
    %17 = arith.addf %15, %16 : vector<16x128xf32>
    %cst_10 = arith.constant 5.000000e-01 : f32
    %18 = vector.broadcast %cst_10 : f32 to vector<16x128xf32>
    %19 = arith.mulf %18, %17 : vector<16x128xf32>
    %20 = arith.subf %11, %1 : vector<16x128xf32>
    %21 = arith.mulf %19, %20 : vector<16x128xf32>
    %22 = arith.addf %1, %21 : vector<16x128xf32>
    %c1 = arith.constant 1 : index
    %c0_11 = arith.constant 0 : index
    %c0_12 = arith.constant 0 : index
    %23 = vector.load %arg2[%c1, %c0_11, %c0_12] : memref<2x128x256xbf16, #tpu.memory_space<vmem>>, vector<1x128x256xbf16>
    %24 = vector.shape_cast %23 : vector<1x128x256xbf16> to vector<128x256xbf16>
    %c1_13 = arith.constant 1 : index
    %c0_14 = arith.constant 0 : index
    %c0_15 = arith.constant 0 : index
    %25 = vector.load %arg3[%c1_13, %c0_14, %c0_15] : memref<2x1x256xf32, #tpu.memory_space<vmem>>, vector<1x1x256xf32>
    %26 = vector.shape_cast %25 : vector<1x1x256xf32> to vector<1x256xf32>
    %27 = arith.truncf %22 : vector<16x128xf32> to vector<16x128xbf16>
    %cst_16 = arith.constant dense<0.000000e+00> : vector<16x256xf32>
    %28 = tpu.matmul %27, %24, %cst_16 {dimension_numbers = #tpu.dot_dimension_numbers<[1], [0], [0], [1], [0, 0, 1, 1], [], []>} : vector<16x128xbf16>, vector<128x256xbf16>, vector<16x256xf32> -> vector<16x256xf32>
    %29 = vector.broadcast %26 : vector<1x256xf32> to vector<16x256xf32>
    %30 = arith.addf %28, %29 : vector<16x256xf32>
    %31 = vector.extract_strided_slice %30 {offsets = [0, 0], sizes = [16, 128], strides = [1, 1]} : vector<16x256xf32> to vector<16x128xf32>
    %cst_17 = arith.constant 0.000000e+00 : f32
    %32 = vector.broadcast %cst_17 : f32 to vector<16x128xf32>
    %33 = arith.maximumf %31, %32 : vector<16x128xf32>
    %34 = vector.extract_strided_slice %30 {offsets = [0, 128], sizes = [16, 128], strides = [1, 1]} : vector<16x256xf32> to vector<16x128xf32>
    %cst_18 = arith.constant 5.000000e-01 : f32
    %35 = vector.broadcast %cst_18 : f32 to vector<16x128xf32>
    %36 = arith.mulf %35, %34 : vector<16x128xf32>
    %37 = math.tanh %36 : vector<16x128xf32>
    %cst_19 = arith.constant 1.000000e+00 : f32
    %38 = vector.broadcast %cst_19 : f32 to vector<16x128xf32>
    %39 = arith.addf %37, %38 : vector<16x128xf32>
    %cst_20 = arith.constant 5.000000e-01 : f32
    %40 = vector.broadcast %cst_20 : f32 to vector<16x128xf32>
    %41 = arith.mulf %40, %39 : vector<16x128xf32>
    %42 = arith.subf %33, %22 : vector<16x128xf32>
    %43 = arith.mulf %41, %42 : vector<16x128xf32>
    %44 = arith.addf %22, %43 : vector<16x128xf32>
    %c0_21 = arith.constant 0 : index
    %c0_22 = arith.constant 0 : index
    %45 = vector.load %arg4[%c0_21, %c0_22] : memref<16x128xf32, #tpu.memory_space<vmem>>, vector<16x128xf32>
    tpu.vector_store %arg4[%c0_21, %c0_22], %44 {strides = array<i32>} : memref<16x128xf32, #tpu.memory_space<vmem>>, vector<16x128xf32>,
    return
  }
  func.func @transform_0(%arg0: i32) -> (i32, i32) {
    %c0_i32 = arith.constant 0 : i32
    %c0_i32_0 = arith.constant 0 : i32
    return %arg0, %c0_i32 : i32, i32
  }
  func.func @transform_1(%arg0: i32) -> (i32, i32, i32) {
    %c0_i32 = arith.constant 0 : i32
    %c0_i32_0 = arith.constant 0 : i32
    %c0_i32_1 = arith.constant 0 : i32
    %c0_i32_2 = arith.constant 0 : i32
    return %c0_i32, %c0_i32_0, %c0_i32_1 : i32, i32, i32
  }
  func.func @transform_2(%arg0: i32) -> (i32, i32, i32) {
    %c0_i32 = arith.constant 0 : i32
    %c0_i32_0 = arith.constant 0 : i32
    %c0_i32_1 = arith.constant 0 : i32
    %c0_i32_2 = arith.constant 0 : i32
    return %c0_i32, %c0_i32_0, %c0_i32_1 : i32, i32, i32
  }
  func.func @transform_3(%arg0: i32) -> (i32, i32) {
    %c0_i32 = arith.constant 0 : i32
    %c0_i32_0 = arith.constant 0 : i32
    return %arg0, %c0_i32 : i32, i32
  }
}

module attributes {stable_mosaic.version = 11 : i64} {
  func.func @highway_kernel(%arg0: i32, %arg1: memref<16x128xbf16, #tpu.memory_space<vmem>>, %arg2: memref<2x128x256xbf16, #tpu.memory_space<vmem>>, %arg3: memref<2x1x256xf32, #tpu.memory_space<vmem>>, %arg4: memref<16x128xf32, #tpu.memory_space<vmem>>) attributes {dimension_semantics = [#tpu.dimension_semantics<parallel>], iteration_bounds = array<i64: 1>, scalar_prefetch = 0 : i64, scratch_operands = 0 : i64, tpu.core_type = #tpu.core_type<tc>, window_params = [{transform_indices = @transform_0, window_bounds = array<i64: 16, 128>}, {pipeline_mode = #tpu.pipeline_mode<synchronous>, transform_indices = @transform_1, window_bounds = array<i64: 2, 128, 256>}, {pipeline_mode = #tpu.pipeline_mode<synchronous>, transform_indices = @transform_2, window_bounds = array<i64: 2, 1, 256>}, {transform_indices = @transform_3, window_bounds = array<i64: 16, 128>}]} {
    %c0 = arith.constant 0 : index
    %c0_0 = arith.constant 0 : index
    %0 = vector.load %arg1[%c0, %c0_0] : memref<16x128xbf16, #tpu.memory_space<vmem>>, vector<16x128xbf16>
    %1 = arith.extf %0 : vector<16x128xbf16> to vector<16x128xf32>
    %c0_1 = arith.constant 0 : index
    %c0_2 = arith.constant 0 : index
    %c0_3 = arith.constant 0 : index
    %2 = vector.load %arg2[%c0_1, %c0_2, %c0_3] : memref<2x128x256xbf16, #tpu.memory_space<vmem>>, vector<1x128x256xbf16>
    %3 = vector.shape_cast %2 : vector<1x128x256xbf16> to vector<128x256xbf16>
    %c0_4 = arith.constant 0 : index
    %c0_5 = arith.constant 0 : index
    %c0_6 = arith.constant 0 : index
    %4 = vector.load %arg3[%c0_4, %c0_5, %c0_6] : memref<2x1x256xf32, #tpu.memory_space<vmem>>, vector<1x1x256xf32>
    %5 = vector.shape_cast %4 : vector<1x1x256xf32> to vector<1x256xf32>
    %cst = arith.constant dense<0.000000e+00> : vector<16x256xf32>
    %6 = tpu.matmul %0, %3, %cst {dimension_numbers = #tpu.dot_dimension_numbers<[1], [0], [0], [1], [0, 0, 1, 1], [], []>} : vector<16x128xbf16>, vector<128x256xbf16>, vector<16x256xf32> -> vector<16x256xf32>
    %7 = vector.broadcast %5 : vector<1x256xf32> to vector<16x256xf32>
    %8 = arith.addf %6, %7 : vector<16x256xf32>
    %9 = vector.extract_strided_slice %8 {offsets = [0, 0], sizes = [16, 128], strides = [1, 1]} : vector<16x256xf32> to vector<16x128xf32>
    %cst_7 = arith.constant 0.000000e+00 : f32
    %10 = vector.broadcast %cst_7 : f32 to vector<16x128xf32>
    %11 = arith.maximumf %9, %10 : vector<16x128xf32>
    %12 = vector.extract_strided_slice %8 {offsets = [0, 128], sizes = [16, 128], strides = [1, 1]} : vector<16x256xf32> to vector<16x128xf32>
    %cst_8 = arith.constant 5.000000e-01 : f32
    %13 = vector.broadcast %cst_8 : f32 to vector<16x128xf32>
    %14 = arith.mulf %13, %12 : vector<16x128xf32>
    %15 = math.tanh %14 : vector<16x128xf32>
    %cst_9 = arith.constant 1.000000e+00 : f32
    %16 = vector.broadcast %cst_9 : f32 to vector<16x128xf32>
    %17 = arith.addf %15, %16 : vector<16x128xf32>
    %cst_10 = arith.constant 5.000000e-01 : f32
    %18 = vector.broadcast %cst_10 : f32 to vector<16x128xf32>
    %19 = arith.mulf %18, %17 : vector<16x128xf32>
    %20 = arith.subf %11, %1 : vector<16x128xf32>
    %21 = arith.mulf %19, %20 : vector<16x128xf32>
    %22 = arith.addf %1, %21 : vector<16x128xf32>
    %c1 = arith.constant 1 : index
    %c0_11 = arith.constant 0 : index
    %c0_12 = arith.constant 0 : index
    %23 = vector.load %arg2[%c1, %c0_11, %c0_12] : memref<2x128x256xbf16, #tpu.memory_space<vmem>>, vector<1x128x256xbf16>
    %24 = vector.shape_cast %23 : vector<1x128x256xbf16> to vector<128x256xbf16>
    %c1_13 = arith.constant 1 : index
    %c0_14 = arith.constant 0 : index
    %c0_15 = arith.constant 0 : index
    %25 = vector.load %arg3[%c1_13, %c0_14, %c0_15] : memref<2x1x256xf32, #tpu.memory_space<vmem>>, vector<1x1x256xf32>
    %26 = vector.shape_cast %25 : vector<1x1x256xf32> to vector<1x256xf32>
    %27 = arith.truncf %22 : vector<16x128xf32> to vector<16x128xbf16>
    %cst_16 = arith.constant dense<0.000000e+00> : vector<16x256xf32>
    %28 = tpu.matmul %27, %24, %cst_16 {dimension_numbers = #tpu.dot_dimension_numbers<[1], [0], [0], [1], [0, 0, 1, 1], [], []>} : vector<16x128xbf16>, vector<128x256xbf16>, vector<16x256xf32> -> vector<16x256xf32>
    %29 = vector.broadcast %26 : vector<1x256xf32> to vector<16x256xf32>
    %30 = arith.addf %28, %29 : vector<16x256xf32>
    %31 = vector.extract_strided_slice %30 {offsets = [0, 0], sizes = [16, 128], strides = [1, 1]} : vector<16x256xf32> to vector<16x128xf32>
    %cst_17 = arith.constant 0.000000e+00 : f32
    %32 = vector.broadcast %cst_17 : f32 to vector<16x128xf32>
    %33 = arith.maximumf %31, %32 : vector<16x128xf32>
    %34 = vector.extract_strided_slice %30 {offsets = [0, 128], sizes = [16, 128], strides = [1, 1]} : vector<16x256xf32> to vector<16x128xf32>
    %cst_18 = arith.constant 5.000000e-01 : f32
    %35 = vector.broadcast %cst_18 : f32 to vector<16x128xf32>
    %36 = arith.mulf %35, %34 : vector<16x128xf32>
    %37 = math.tanh %36 : vector<16x128xf32>
    %cst_19 = arith.constant 1.000000e+00 : f32
    %38 = vector.broadcast %cst_19 : f32 to vector<16x128xf32>
    %39 = arith.addf %37, %38 : vector<16x128xf32>
    %cst_20 = arith.constant 5.000000e-01 : f32
    %40 = vector.broadcast %cst_20 : f32 to vector<16x128xf32>
    %41 = arith.mulf %40, %39 : vector<16x128xf32>
    %42 = arith.subf %33, %22 : vector<16x128xf32>
    %43 = arith.mulf %41, %42 : vector<16x128xf32>
    %44 = arith.addf %22, %43 : vector<16x128xf32>
    %c0_21 = arith.constant 0 : index
    %c0_22 = arith.constant 0 : index
    %45 = vector.load %arg4[%c0_21, %c0_22] : memref<16x128xf32, #tpu.memory_space<vmem>>, vector<16x128xf32>
    tpu.vector_store %arg4[%c0_21, %c0_22], %44 {strides = array<i32>} : memref<16x128xf32, #tpu.memory_space<vmem>>, vector<16x128xf32>,
    return
  }
  func.func @transform_0(%arg0: i32) -> (i32, i32) {
    %c0_i32 = arith.constant 0 : i32
    %c0_i32_0 = arith.constant 0 : i32
    return %arg0, %c0_i32 : i32, i32
  }
  func.func @transform_1(%arg0: i32) -> (i32, i32, i32) {
    %c0_i32 = arith.constant 0 : i32
    %c0_i32_0 = arith.constant 0 : i32
    %c0_i32_1 = arith.constant 0 : i32
    %c0_i32_2 = arith.constant 0 : i32
    return %c0_i32, %c0_i32_0, %c0_i32_1 : i32, i32, i32
  }
  func.func @transform_2(%arg0: i32) -> (i32, i32, i32) {
    %c0_i32 = arith.constant 0 : i32
    %c0_i32_0 = arith.constant 0 : i32
    %c0_i32_1 = arith.constant 0 : i32
    %c0_i32_2 = arith.constant 0 : i32
    return %c0_i32, %c0_i32_0, %c0_i32_1 : i32, i32, i32
  }
  func.func @transform_3(%arg0: i32) -> (i32, i32) {
    %c0_i32 = arith.constant 0 : i32
    %c0_i32_0 = arith.constant 0 : i32
    return %arg0, %c0_i32 : i32, i32
  }
}

</mosaic_0001>

<llo_original>
// kernel: tpu_custom_call.1
$region0: #{tpu_custom_call.1}
  #allocation0 [shape = 'u32[]', space=smem, size = 0x4, offset = 0x4, fixed_abs, tag = 'smem constant byte address 0x4 - core index']
  #allocation1 [shape = 'u32[144,128]{1,0:T(1,128)}', space=vmem, size = 0x12000, scoped, tag = 'internal scratch']
  %s0 = inlined_call_operand.hbm [shape: bf16[16,128], index: 0, kind: input, shape index: {}]
  %s1 = inlined_call_operand.hbm [shape: bf16[2,128,256], index: 1, kind: input, shape index: {}]
  %s2 = inlined_call_operand.vmem [shape: f32[2,1,256], index: 2, kind: input, shape index: {}]
  %s3 = inlined_call_operand.hbm [shape: f32[16,128], index: 3, kind: output, shape index: {}]
  %s4 = sld [smem:[#allocation0]]
  $region30: #{tpu_custom_call.1} parent=0
    _
  %s6 = ssub.s32 1, %s4
  %s7 = scalar_select 0, %s6, %s4
  $region1: #{tpu_custom_call.1} parent=0
    #allocation2 [shape = 'u8[4096]{0}', space=vmem, size = 0x1000, scoped, tag = 'input window, operand 0, single buffered']
    #allocation3 [shape = 's32[1]{0}', space=sflag, size = 0x4, scoped, tag = 'scoped memory for tpu_custom_call.1']
    #allocation4 [shape = 's32[1]{0}', space=sflag, size = 0x4, scoped, tag = 'scoped memory for tpu_custom_call.1']
    #allocation5 [shape = 'u8[131072]{0}', space=vmem, size = 0x20000, scoped, tag = 'input window, operand 1, single buffered']
    #allocation6 [shape = 's32[1]{0}', space=sflag, size = 0x4, scoped, tag = 'scoped memory for tpu_custom_call.1']
    #allocation7 [shape = 'u8[8192]{0}', space=vmem, size = 0x2000, scoped, tag = 'output window, operand 0, single buffered']
    %8 = vsyncpa [#allocation3], 0
    %9 = vsyncpa [#allocation6], 0
    %10 = vsyncpa [#allocation4], 0
    // Predicated region
    $region2: #{tpu_custom_call.1} parent=1 // pred_check
      _
    $region3: #{tpu_custom_call.1} parent=1 // pred_check_branch
      %12 = sbr.rel (0) target = $region5
    $region4: #{tpu_custom_call.1} parent=1 // pred_region
      %s14 = ssub.s32 128, 128
      %15 = vsyncadd [#allocation3], %s14
      %s16 = sshll.u32 [#allocation2], 4
      %s17 = int_to_ptr.vmem [resolvable:$true] %s16
      %22 = dma.hbm_to_vmem [thread:$0]  %s0, 128, %s17, [#allocation3], 64, 64, 4
    $region5: #{tpu_custom_call.1} parent=1 // pred_fallthru
      _
    // Predicated region
    $region6: #{tpu_custom_call.1} parent=1 // pred_check
      _
    $region7: #{tpu_custom_call.1} parent=1 // pred_check_branch
      %24 = sbr.rel (0) target = $region9
    $region8: #{tpu_custom_call.1} parent=1 // pred_region
      %s26 = ssub.s32 4096, 4096
      %27 = vsyncadd [#allocation6], %s26
      %s28 = sshll.u32 [#allocation5], 4
      %s29 = int_to_ptr.vmem [resolvable:$true] %s28
      %34 = dma.hbm_to_vmem [thread:$0]  %s1, 4096, %s29, [#allocation6], 128, 128, 8
    $region9: #{tpu_custom_call.1} parent=1 // pred_fallthru
      _
    // Predicated region
    $region10: #{tpu_custom_call.1} parent=1 // pred_check
      _
    $region11: #{tpu_custom_call.1} parent=1 // pred_check_branch
      %36 = sbr.rel (0) target = $region13
    $region12: #{tpu_custom_call.1} parent=1 // pred_region
      _
    $region13: #{tpu_custom_call.1} parent=1 // pred_fallthru
      _
    // Predicated region
    $region14: #{tpu_custom_call.1} parent=1 // pred_check
      _
    $region15: #{tpu_custom_call.1} parent=1 // pred_check_branch
      %38 = sbr.rel (0) target = $region17
    $region16: #{tpu_custom_call.1} parent=1 // pred_region
      %39 = dma.done [#allocation3], 128
    $region17: #{tpu_custom_call.1} parent=1 // pred_fallthru
      _
    // Predicated region
    $region18: #{tpu_custom_call.1} parent=1 // pred_check
      _
    $region19: #{tpu_custom_call.1} parent=1 // pred_check_branch
      %41 = sbr.rel (0) target = $region21
    $region20: #{tpu_custom_call.1} parent=1 // pred_region
      %42 = dma.done [#allocation6], 4096
    $region21: #{tpu_custom_call.1} parent=1 // pred_fallthru
      _
    %v44 = vld [vmem:[#allocation2] sm:$0xf]
    %v45 = vld [vmem:[#allocation2 + $0x4] sm:$0xf]
    %v46 = vunpack.c.l.bf16 %v44
    %v47 = vunpack.c.l.bf16 %v45
    %v48 = vld [vmem:[#allocation5] sm:$0xff]
    %v49 = vld [vmem:[#allocation5 + $0x8] sm:$0xff]
    %v50 = vld [vmem:[#allocation5 + $0x10] sm:$0xff]
    %v51 = vld [vmem:[#allocation5 + $0x18] sm:$0xff]
    %v52 = vld [vmem:[#allocation5 + $0x20] sm:$0xff]
    %v53 = vld [vmem:[#allocation5 + $0x28] sm:$0xff]
    %v54 = vld [vmem:[#allocation5 + $0x30] sm:$0xff]
    %v55 = vld [vmem:[#allocation5 + $0x38] sm:$0xff]
    %v56 = vld [vmem:[#allocation5 + $0x40] sm:$0xff]
    %v57 = vld [vmem:[#allocation5 + $0x48] sm:$0xff]
    %v58 = vld [vmem:[#allocation5 + $0x50] sm:$0xff]
    %v59 = vld [vmem:[#allocation5 + $0x58] sm:$0xff]
    %v60 = vld [vmem:[#allocation5 + $0x60] sm:$0xff]
    %v61 = vld [vmem:[#allocation5 + $0x68] sm:$0xff]
    %v62 = vld [vmem:[#allocation5 + $0x70] sm:$0xff]
    %v63 = vld [vmem:[#allocation5 + $0x78] sm:$0xff]
    %v64 = vld [vmem:[%s2] sm:$0x3]
    %v66 = vlaneseq
    %v67 = vshrl.u32 %v66, 7
    %v68 = vsub.s32 0, %v67
    %v69 = vrot.slane %v64, %v68
    %v70 = vlaneseq
    %v71 = vshrl.u32 %v70, 7
    %v72 = vsub.s32 1, %v71
    %v73 = vrot.slane %v64, %v72
    %v78 = vunpack.c.l.b16 %v44
    %v79 = vunpack.c.l.b16 %v45
    %v80 = vpack.c.b16 %v79, %v78
    %v98 = vunpack.c.l.b16 %v48
    %v99 = vunpack.c.h.b16 %v48
    %v100 = vunpack.c.l.b16 %v49
    %v101 = vunpack.c.h.b16 %v49
    %v102 = vunpack.c.l.b16 %v50
    %v103 = vunpack.c.h.b16 %v50
    %v104 = vunpack.c.l.b16 %v51
    %v105 = vunpack.c.h.b16 %v51
    %v106 = vunpack.c.l.b16 %v52
    %v107 = vunpack.c.h.b16 %v52
    %v108 = vunpack.c.l.b16 %v53
    %v109 = vunpack.c.h.b16 %v53
    %v110 = vunpack.c.l.b16 %v54
    %v111 = vunpack.c.h.b16 %v54
    %v112 = vunpack.c.l.b16 %v55
    %v113 = vunpack.c.h.b16 %v55
    %v114 = vunpack.c.l.b16 %v56
    %v115 = vunpack.c.h.b16 %v56
    %v116 = vunpack.c.l.b16 %v57
    %v117 = vunpack.c.h.b16 %v57
    %v118 = vunpack.c.l.b16 %v58
    %v119 = vunpack.c.h.b16 %v58
    %v120 = vunpack.c.l.b16 %v59
    %v121 = vunpack.c.h.b16 %v59
    %v122 = vunpack.c.l.b16 %v60
    %v123 = vunpack.c.h.b16 %v60
    %v124 = vunpack.c.l.b16 %v61
    %v125 = vunpack.c.h.b16 %v61
    %v126 = vunpack.c.l.b16 %v62
    %v127 = vunpack.c.h.b16 %v62
    %v128 = vunpack.c.l.b16 %v63
    %v129 = vunpack.c.h.b16 %v63
    %v130 = vpack.c.b16 %v100, %v98
    %v131 = vpack.c.b16 %v101, %v99
    %v132 = vpack.c.b16 %v104, %v102
    %v133 = vpack.c.b16 %v105, %v103
    %v134 = vpack.c.b16 %v108, %v106
    %v135 = vpack.c.b16 %v109, %v107
    %v136 = vpack.c.b16 %v112, %v110
    %v137 = vpack.c.b16 %v113, %v111
    %v138 = vpack.c.b16 %v116, %v114
    %v139 = vpack.c.b16 %v117, %v115
    %v140 = vpack.c.b16 %v120, %v118
    %v141 = vpack.c.b16 %v121, %v119
    %v142 = vpack.c.b16 %v124, %v122
    %v143 = vpack.c.b16 %v125, %v123
    %v144 = vpack.c.b16 %v128, %v126
    %v145 = vpack.c.b16 %v129, %v127
    %162 = vmatprep.subr.bf16.mxu0 %v131
    %163 = vmatpush1.bf16.msra.mxu0 %v130
    %164 = vmatprep.subr.bf16.mxu0 %v133
    %165 = vmatpush1.bf16.msra.mxu0 %v132
    %166 = vmatprep.subr.bf16.mxu0 %v135
    %167 = vmatpush1.bf16.msra.mxu0 %v134
    %168 = vmatprep.subr.bf16.mxu0 %v137
    %169 = vmatpush1.bf16.msra.mxu0 %v136
    %170 = vmatprep.subr.bf16.mxu0 %v139
    %171 = vmatpush1.bf16.msra.mxu0 %v138
    %172 = vmatprep.subr.bf16.mxu0 %v141
    %173 = vmatpush1.bf16.msra.mxu0 %v140
    %174 = vmatprep.subr.bf16.mxu0 %v143
    %175 = vmatpush1.bf16.msra.mxu0 %v142
    %176 = vmatprep.subr.bf16.mxu0 %v145
    %177 = vmatpush1.bf16.msra.mxu0 %v144
    %178 = vmatprep.subr.bf16.mxu0 0
    %179 = vmatpush1.bf16.msra.mxu0 0
    %180 = vmatprep.subr.bf16.mxu0 0
    %181 = vmatpush1.bf16.msra.mxu0 0
    %182 = vmatprep.subr.bf16.mxu0 0
    %183 = vmatpush1.bf16.msra.mxu0 0
    %184 = vmatprep.subr.bf16.mxu0 0
    %185 = vmatpush1.bf16.msra.mxu0 0
    %186 = vmatprep.subr.bf16.mxu0 0
    %187 = vmatpush1.bf16.msra.mxu0 0
    %188 = vmatprep.subr.bf16.mxu0 0
    %189 = vmatpush1.bf16.msra.mxu0 0
    %190 = vmatprep.subr.bf16.mxu0 0
    %191 = vmatpush1.bf16.msra.mxu0 0
    %192 = vmatprep.subr.bf16.mxu0 0
    %193 = vmatpush1.bf16.msra.mxu0 0
    %194 = vmatprep.mubr.bf16.mxu0 0
    %195 = vmatmul.mubr.bf16.gmra.mrb[0].mxu0 %v80
    %v196 = vpop.f32.mrb[0].mxu0
    %v197 = vadd.f32 %v69, %v196
    %v198 = vpop.f32.mrb[0].mxu0
    %v199 = vadd.f32 %v73, %v198
    %v200 = vpop.f32.mrb[0].mxu0
    %v201 = vadd.f32 %v69, %v200
    %v202 = vpop.f32.mrb[0].mxu0
    %v203 = vadd.f32 %v73, %v202
    %204 = vdwg.mxu0
    %v205 = vmax.f32 %v197, 0.0
    %v206 = vmax.f32 %v201, 0.0
    %v207 = vmul.f32 %v199, 0.5
    %v208 = vmul.f32 %v203, 0.5
    %v209 = vtanh.pop %v207
    %v210 = vtanh.pop %v208
    %v211 = vadd.f32 %v209, 1.0
    %v212 = vadd.f32 %v210, 1.0
    %v213 = vmul.f32 %v211, 0.5
    %v214 = vmul.f32 %v212, 0.5
    %v215 = vsub.f32 %v205, %v46
    %v216 = vsub.f32 %v206, %v47
    %v217 = vmul.f32 %v213, %v215
    %v218 = vmul.f32 %v214, %v216
    %v219 = vadd.f32 %v46, %v217
    %v220 = vadd.f32 %v47, %v218
    %s221 = scalar_lea.vmem [#allocation5], 128
    %v222 = vld [vmem:[%s221] sm:$0xff]
    %v223 = vld [vmem:[%s221 + $0x8] sm:$0xff]
    %v224 = vld [vmem:[%s221 + $0x10] sm:$0xff]
    %v225 = vld [vmem:[%s221 + $0x18] sm:$0xff]
    %v226 = vld [vmem:[%s221 + $0x20] sm:$0xff]
    %v227 = vld [vmem:[%s221 + $0x28] sm:$0xff]
    %v228 = vld [vmem:[%s221 + $0x30] sm:$0xff]
    %v229 = vld [vmem:[%s221 + $0x38] sm:$0xff]
    %v230 = vld [vmem:[%s221 + $0x40] sm:$0xff]
    %v231 = vld [vmem:[%s221 + $0x48] sm:$0xff]
    %v232 = vld [vmem:[%s221 + $0x50] sm:$0xff]
    %v233 = vld [vmem:[%s221 + $0x58] sm:$0xff]
    %v234 = vld [vmem:[%s221 + $0x60] sm:$0xff]
    %v235 = vld [vmem:[%s221 + $0x68] sm:$0xff]
    %v236 = vld [vmem:[%s221 + $0x70] sm:$0xff]
    %v237 = vld [vmem:[%s221 + $0x78] sm:$0xff]
    %s238 = scalar_lea.vmem %s2, 2
    %v239 = vld [vmem:[%s238] sm:$0x3]
    %v240 = vpack.c.bf16 %v220, %v219
    %v242 = vlaneseq
    %v243 = vshrl.u32 %v242, 7
    %v244 = vsub.s32 0, %v243
    %v245 = vrot.slane %v239, %v244
    %v246 = vlaneseq
    %v247 = vshrl.u32 %v246, 7
    %v248 = vsub.s32 1, %v247
    %v249 = vrot.slane %v239, %v248
    %v268 = vunpack.c.l.b16 %v222
    %v269 = vunpack.c.h.b16 %v222
    %v270 = vunpack.c.l.b16 %v223
    %v271 = vunpack.c.h.b16 %v223
    %v272 = vunpack.c.l.b16 %v224
    %v273 = vunpack.c.h.b16 %v224
    %v274 = vunpack.c.l.b16 %v225
    %v275 = vunpack.c.h.b16 %v225
    %v276 = vunpack.c.l.b16 %v226
    %v277 = vunpack.c.h.b16 %v226
    %v278 = vunpack.c.l.b16 %v227
    %v279 = vunpack.c.h.b16 %v227
    %v280 = vunpack.c.l.b16 %v228
    %v281 = vunpack.c.h.b16 %v228
    %v282 = vunpack.c.l.b16 %v229
    %v283 = vunpack.c.h.b16 %v229
    %v284 = vunpack.c.l.b16 %v230
    %v285 = vunpack.c.h.b16 %v230
    %v286 = vunpack.c.l.b16 %v231
    %v287 = vunpack.c.h.b16 %v231
    %v288 = vunpack.c.l.b16 %v232
    %v289 = vunpack.c.h.b16 %v232
    %v290 = vunpack.c.l.b16 %v233
    %v291 = vunpack.c.h.b16 %v233
    %v292 = vunpack.c.l.b16 %v234
    %v293 = vunpack.c.h.b16 %v234
    %v294 = vunpack.c.l.b16 %v235
    %v295 = vunpack.c.h.b16 %v235
    %v296 = vunpack.c.l.b16 %v236
    %v297 = vunpack.c.h.b16 %v236
    %v298 = vunpack.c.l.b16 %v237
    %v299 = vunpack.c.h.b16 %v237
    %v300 = vpack.c.b16 %v270, %v268
    %v301 = vpack.c.b16 %v271, %v269
    %v302 = vpack.c.b16 %v274, %v272
    %v303 = vpack.c.b16 %v275, %v273
    %v304 = vpack.c.b16 %v278, %v276
    %v305 = vpack.c.b16 %v279, %v277
    %v306 = vpack.c.b16 %v282, %v280
    %v307 = vpack.c.b16 %v283, %v281
    %v308 = vpack.c.b16 %v286, %v284
    %v309 = vpack.c.b16 %v287, %v285
    %v310 = vpack.c.b16 %v290, %v288
    %v311 = vpack.c.b16 %v291, %v289
    %v312 = vpack.c.b16 %v294, %v292
    %v313 = vpack.c.b16 %v295, %v293
    %v314 = vpack.c.b16 %v298, %v296
    %v315 = vpack.c.b16 %v299, %v297
    %332 = vmatprep.subr.bf16.mxu0 %v301
    %333 = vmatpush1.bf16.msra.mxu0 %v300
    %334 = vmatprep.subr.bf16.mxu0 %v303
    %335 = vmatpush1.bf16.msra.mxu0 %v302
    %336 = vmatprep.subr.bf16.mxu0 %v305
    %337 = vmatpush1.bf16.msra.mxu0 %v304
    %338 = vmatprep.subr.bf16.mxu0 %v307
    %339 = vmatpush1.bf16.msra.mxu0 %v306
    %340 = vmatprep.subr.bf16.mxu0 %v309
    %341 = vmatpush1.bf16.msra.mxu0 %v308
    %342 = vmatprep.subr.bf16.mxu0 %v311
    %343 = vmatpush1.bf16.msra.mxu0 %v310
    %344 = vmatprep.subr.bf16.mxu0 %v313
    %345 = vmatpush1.bf16.msra.mxu0 %v312
    %346 = vmatprep.subr.bf16.mxu0 %v315
    %347 = vmatpush1.bf16.msra.mxu0 %v314
    %348 = vmatprep.subr.bf16.mxu0 0
    %349 = vmatpush1.bf16.msra.mxu0 0
    %350 = vmatprep.subr.bf16.mxu0 0
    %351 = vmatpush1.bf16.msra.mxu0 0
    %352 = vmatprep.subr.bf16.mxu0 0
    %353 = vmatpush1.bf16.msra.mxu0 0
    %354 = vmatprep.subr.bf16.mxu0 0
    %355 = vmatpush1.bf16.msra.mxu0 0
    %356 = vmatprep.subr.bf16.mxu0 0
    %357 = vmatpush1.bf16.msra.mxu0 0
    %358 = vmatprep.subr.bf16.mxu0 0
    %359 = vmatpush1.bf16.msra.mxu0 0
    %360 = vmatprep.subr.bf16.mxu0 0
    %361 = vmatpush1.bf16.msra.mxu0 0
    %362 = vmatprep.subr.bf16.mxu0 0
    %363 = vmatpush1.bf16.msra.mxu0 0
    %364 = vmatprep.mubr.bf16.mxu0 0
    %365 = vmatmul.mubr.bf16.gmra.mrb[0].mxu0 %v240
    %v366 = vpop.f32.mrb[0].mxu0
    %v367 = vadd.f32 %v245, %v366
    %v368 = vpop.f32.mrb[0].mxu0
    %v369 = vadd.f32 %v249, %v368
    %v370 = vpop.f32.mrb[0].mxu0
    %v371 = vadd.f32 %v245, %v370
    %v372 = vpop.f32.mrb[0].mxu0
    %v373 = vadd.f32 %v249, %v372
    %374 = vdwg.mxu0
    %v375 = vmax.f32 %v367, 0.0
    %v376 = vmax.f32 %v371, 0.0
    %v377 = vmul.f32 %v369, 0.5
    %v378 = vmul.f32 %v373, 0.5
    %v379 = vtanh.pop %v377
    %v380 = vtanh.pop %v378
    %v381 = vadd.f32 %v379, 1.0
    %v382 = vadd.f32 %v380, 1.0
    %v383 = vmul.f32 %v381, 0.5
    %v384 = vmul.f32 %v382, 0.5
    %v385 = vsub.f32 %v375, %v219
    %v386 = vsub.f32 %v376, %v220
    %v387 = vmul.f32 %v383, %v385
    %v388 = vmul.f32 %v384, %v386
    %v389 = vadd.f32 %v219, %v387
    %v390 = vadd.f32 %v220, %v388
    %391 = vst [vmem:[#allocation7] sm:$0xff] %v389
    %392 = vst [vmem:[#allocation7 + $0x8] sm:$0xff] %v390
    // Predicated region
    $region22: #{tpu_custom_call.1} parent=1 // pred_check
      _
    $region23: #{tpu_custom_call.1} parent=1 // pred_check_branch
      %394 = sbr.rel (0) target = $region25
    $region24: #{tpu_custom_call.1} parent=1 // pred_region
      %s396 = ssub.s32 256, 256
      %397 = vsyncadd [#allocation4], %s396
      %s398 = sshll.u32 [#allocation7], 4
      %s399 = int_to_ptr.vmem [resolvable:$true] %s398
      %404 = dma.vmem_to_hbm [thread:$0]  %s399, 256, %s3, [#allocation4], 128, 128, 8
    $region25: #{tpu_custom_call.1} parent=1 // pred_fallthru
      _
    // Predicated region
    $region26: #{tpu_custom_call.1} parent=1 // pred_check
      _
    $region27: #{tpu_custom_call.1} parent=1 // pred_check_branch
      %406 = sbr.rel (0) target = $region29
    $region28: #{tpu_custom_call.1} parent=1 // pred_region
      %407 = dma.done [#allocation4], 256
    $region29: #{tpu_custom_call.1} parent=1 // pred_fallthru
      _
    %408 = vsyncpa [#allocation3], 1
    %409 = vsyncpa [#allocation6], 1
    %410 = vsyncpa [#allocation4], 1

// kernel: tpu_custom_call.1
$region0: #{tpu_custom_call.1}
  #allocation0 [shape = 'u32[]', space=smem, size = 0x4, offset = 0x4, fixed_abs, tag = 'smem constant byte address 0x4 - core index']
  #allocation1 [shape = 'u32[144,128]{1,0:T(1,128)}', space=vmem, size = 0x12000, scoped, tag = 'internal scratch']
  %s0 = inlined_call_operand.hbm [shape: bf16[16,128], index: 0, kind: input, shape index: {}]
  %s1 = inlined_call_operand.hbm [shape: bf16[2,128,256], index: 1, kind: input, shape index: {}]
  %s2 = inlined_call_operand.vmem [shape: f32[2,1,256], index: 2, kind: input, shape index: {}]
  %s3 = inlined_call_operand.hbm [shape: f32[16,128], index: 3, kind: output, shape index: {}]
  %s4 = sld [smem:[#allocation0]]
  $region30: #{tpu_custom_call.1} parent=0
    _
  %s6 = ssub.s32 1, %s4
  %s7 = scalar_select 0, %s6, %s4
  $region1: #{tpu_custom_call.1} parent=0
    #allocation2 [shape = 'u8[4096]{0}', space=vmem, size = 0x1000, scoped, tag = 'input window, operand 0, single buffered']
    #allocation3 [shape = 's32[1]{0}', space=sflag, size = 0x4, scoped, tag = 'scoped memory for tpu_custom_call.1']
    #allocation4 [shape = 's32[1]{0}', space=sflag, size = 0x4, scoped, tag = 'scoped memory for tpu_custom_call.1']
    #allocation5 [shape = 'u8[131072]{0}', space=vmem, size = 0x20000, scoped, tag = 'input window, operand 1, single buffered']
    #allocation6 [shape = 's32[1]{0}', space=sflag, size = 0x4, scoped, tag = 'scoped memory for tpu_custom_call.1']
    #allocation7 [shape = 'u8[8192]{0}', space=vmem, size = 0x2000, scoped, tag = 'output window, operand 0, single buffered']
    %8 = vsyncpa [#allocation3], 0
    %9 = vsyncpa [#allocation6], 0
    %10 = vsyncpa [#allocation4], 0
    // Predicated region
    $region2: #{tpu_custom_call.1} parent=1 // pred_check
      _
    $region3: #{tpu_custom_call.1} parent=1 // pred_check_branch
      %12 = sbr.rel (0) target = $region5
    $region4: #{tpu_custom_call.1} parent=1 // pred_region
      %s14 = ssub.s32 128, 128
      %15 = vsyncadd [#allocation3], %s14
      %s16 = sshll.u32 [#allocation2], 4
      %s17 = int_to_ptr.vmem [resolvable:$true] %s16
      %22 = dma.hbm_to_vmem [thread:$0]  %s0, 128, %s17, [#allocation3], 64, 64, 4
    $region5: #{tpu_custom_call.1} parent=1 // pred_fallthru
      _
    // Predicated region
    $region6: #{tpu_custom_call.1} parent=1 // pred_check
      _
    $region7: #{tpu_custom_call.1} parent=1 // pred_check_branch
      %24 = sbr.rel (0) target = $region9
    $region8: #{tpu_custom_call.1} parent=1 // pred_region
      %s26 = ssub.s32 4096, 4096
      %27 = vsyncadd [#allocation6], %s26
      %s28 = sshll.u32 [#allocation5], 4
      %s29 = int_to_ptr.vmem [resolvable:$true] %s28
      %34 = dma.hbm_to_vmem [thread:$0]  %s1, 4096, %s29, [#allocation6], 128, 128, 8
    $region9: #{tpu_custom_call.1} parent=1 // pred_fallthru
      _
    // Predicated region
    $region10: #{tpu_custom_call.1} parent=1 // pred_check
      _
    $region11: #{tpu_custom_call.1} parent=1 // pred_check_branch
      %36 = sbr.rel (0) target = $region13
    $region12: #{tpu_custom_call.1} parent=1 // pred_region
      _
    $region13: #{tpu_custom_call.1} parent=1 // pred_fallthru
      _
    // Predicated region
    $region14: #{tpu_custom_call.1} parent=1 // pred_check
      _
    $region15: #{tpu_custom_call.1} parent=1 // pred_check_branch
      %38 = sbr.rel (0) target = $region17
    $region16: #{tpu_custom_call.1} parent=1 // pred_region
      %39 = dma.done [#allocation3], 128
    $region17: #{tpu_custom_call.1} parent=1 // pred_fallthru
      _
    // Predicated region
    $region18: #{tpu_custom_call.1} parent=1 // pred_check
      _
    $region19: #{tpu_custom_call.1} parent=1 // pred_check_branch
      %41 = sbr.rel (0) target = $region21
    $region20: #{tpu_custom_call.1} parent=1 // pred_region
      %42 = dma.done [#allocation6], 4096
    $region21: #{tpu_custom_call.1} parent=1 // pred_fallthru
      _
    %v44 = vld [vmem:[#allocation2] sm:$0xf]
    %v45 = vld [vmem:[#allocation2 + $0x4] sm:$0xf]
    %v46 = vunpack.c.l.bf16 %v44
    %v47 = vunpack.c.l.bf16 %v45
    %v48 = vld [vmem:[#allocation5] sm:$0xff]
    %v49 = vld [vmem:[#allocation5 + $0x8] sm:$0xff]
    %v50 = vld [vmem:[#allocation5 + $0x10] sm:$0xff]
    %v51 = vld [vmem:[#allocation5 + $0x18] sm:$0xff]
    %v52 = vld [vmem:[#allocation5 + $0x20] sm:$0xff]
    %v53 = vld [vmem:[#allocation5 + $0x28] sm:$0xff]
    %v54 = vld [vmem:[#allocation5 + $0x30] sm:$0xff]
    %v55 = vld [vmem:[#allocation5 + $0x38] sm:$0xff]
    %v56 = vld [vmem:[#allocation5 + $0x40] sm:$0xff]
    %v57 = vld [vmem:[#allocation5 + $0x48] sm:$0xff]
    %v58 = vld [vmem:[#allocation5 + $0x50] sm:$0xff]
    %v59 = vld [vmem:[#allocation5 + $0x58] sm:$0xff]
    %v60 = vld [vmem:[#allocation5 + $0x60] sm:$0xff]
    %v61 = vld [vmem:[#allocation5 + $0x68] sm:$0xff]
    %v62 = vld [vmem:[#allocation5 + $0x70] sm:$0xff]
    %v63 = vld [vmem:[#allocation5 + $0x78] sm:$0xff]
    %v64 = vld [vmem:[%s2] sm:$0x3]
    %v66 = vlaneseq
    %v67 = vshrl.u32 %v66, 7
    %v68 = vsub.s32 0, %v67
    %v69 = vrot.slane %v64, %v68
    %v70 = vlaneseq
    %v71 = vshrl.u32 %v70, 7
    %v72 = vsub.s32 1, %v71
    %v73 = vrot.slane %v64, %v72
    %v78 = vunpack.c.l.b16 %v44
    %v79 = vunpack.c.l.b16 %v45
    %v80 = vpack.c.b16 %v79, %v78
    %v98 = vunpack.c.l.b16 %v48
    %v99 = vunpack.c.h.b16 %v48
    %v100 = vunpack.c.l.b16 %v49
    %v101 = vunpack.c.h.b16 %v49
    %v102 = vunpack.c.l.b16 %v50
    %v103 = vunpack.c.h.b16 %v50
    %v104 = vunpack.c.l.b16 %v51
    %v105 = vunpack.c.h.b16 %v51
    %v106 = vunpack.c.l.b16 %v52
    %v107 = vunpack.c.h.b16 %v52
    %v108 = vunpack.c.l.b16 %v53
    %v109 = vunpack.c.h.b16 %v53
    %v110 = vunpack.c.l.b16 %v54
    %v111 = vunpack.c.h.b16 %v54
    %v112 = vunpack.c.l.b16 %v55
    %v113 = vunpack.c.h.b16 %v55
    %v114 = vunpack.c.l.b16 %v56
    %v115 = vunpack.c.h.b16 %v56
    %v116 = vunpack.c.l.b16 %v57
    %v117 = vunpack.c.h.b16 %v57
    %v118 = vunpack.c.l.b16 %v58
    %v119 = vunpack.c.h.b16 %v58
    %v120 = vunpack.c.l.b16 %v59
    %v121 = vunpack.c.h.b16 %v59
    %v122 = vunpack.c.l.b16 %v60
    %v123 = vunpack.c.h.b16 %v60
    %v124 = vunpack.c.l.b16 %v61
    %v125 = vunpack.c.h.b16 %v61
    %v126 = vunpack.c.l.b16 %v62
    %v127 = vunpack.c.h.b16 %v62
    %v128 = vunpack.c.l.b16 %v63
    %v129 = vunpack.c.h.b16 %v63
    %v130 = vpack.c.b16 %v100, %v98
    %v131 = vpack.c.b16 %v101, %v99
    %v132 = vpack.c.b16 %v104, %v102
    %v133 = vpack.c.b16 %v105, %v103
    %v134 = vpack.c.b16 %v108, %v106
    %v135 = vpack.c.b16 %v109, %v107
    %v136 = vpack.c.b16 %v112, %v110
    %v137 = vpack.c.b16 %v113, %v111
    %v138 = vpack.c.b16 %v116, %v114
    %v139 = vpack.c.b16 %v117, %v115
    %v140 = vpack.c.b16 %v120, %v118
    %v141 = vpack.c.b16 %v121, %v119
    %v142 = vpack.c.b16 %v124, %v122
    %v143 = vpack.c.b16 %v125, %v123
    %v144 = vpack.c.b16 %v128, %v126
    %v145 = vpack.c.b16 %v129, %v127
    %162 = vmatprep.subr.bf16.mxu0 %v131
    %163 = vmatpush1.bf16.msra.mxu0 %v130
    %164 = vmatprep.subr.bf16.mxu0 %v133
    %165 = vmatpush1.bf16.msra.mxu0 %v132
    %166 = vmatprep.subr.bf16.mxu0 %v135
    %167 = vmatpush1.bf16.msra.mxu0 %v134
    %168 = vmatprep.subr.bf16.mxu0 %v137
    %169 = vmatpush1.bf16.msra.mxu0 %v136
    %170 = vmatprep.subr.bf16.mxu0 %v139
    %171 = vmatpush1.bf16.msra.mxu0 %v138
    %172 = vmatprep.subr.bf16.mxu0 %v141
    %173 = vmatpush1.bf16.msra.mxu0 %v140
    %174 = vmatprep.subr.bf16.mxu0 %v143
    %175 = vmatpush1.bf16.msra.mxu0 %v142
    %176 = vmatprep.subr.bf16.mxu0 %v145
    %177 = vmatpush1.bf16.msra.mxu0 %v144
    %178 = vmatprep.subr.bf16.mxu0 0
    %179 = vmatpush1.bf16.msra.mxu0 0
    %180 = vmatprep.subr.bf16.mxu0 0
    %181 = vmatpush1.bf16.msra.mxu0 0
    %182 = vmatprep.subr.bf16.mxu0 0
    %183 = vmatpush1.bf16.msra.mxu0 0
    %184 = vmatprep.subr.bf16.mxu0 0
    %185 = vmatpush1.bf16.msra.mxu0 0
    %186 = vmatprep.subr.bf16.mxu0 0
    %187 = vmatpush1.bf16.msra.mxu0 0
    %188 = vmatprep.subr.bf16.mxu0 0
    %189 = vmatpush1.bf16.msra.mxu0 0
    %190 = vmatprep.subr.bf16.mxu0 0
    %191 = vmatpush1.bf16.msra.mxu0 0
    %192 = vmatprep.subr.bf16.mxu0 0
    %193 = vmatpush1.bf16.msra.mxu0 0
    %194 = vmatprep.mubr.bf16.mxu0 0
    %195 = vmatmul.mubr.bf16.gmra.mrb[0].mxu0 %v80
    %v196 = vpop.f32.mrb[0].mxu0
    %v197 = vadd.f32 %v69, %v196
    %v198 = vpop.f32.mrb[0].mxu0
    %v199 = vadd.f32 %v73, %v198
    %v200 = vpop.f32.mrb[0].mxu0
    %v201 = vadd.f32 %v69, %v200
    %v202 = vpop.f32.mrb[0].mxu0
    %v203 = vadd.f32 %v73, %v202
    %204 = vdwg.mxu0
    %v205 = vmax.f32 %v197, 0.0
    %v206 = vmax.f32 %v201, 0.0
    %v207 = vmul.f32 %v199, 0.5
    %v208 = vmul.f32 %v203, 0.5
    %v209 = vtanh.pop %v207
    %v210 = vtanh.pop %v208
    %v211 = vadd.f32 %v209, 1.0
    %v212 = vadd.f32 %v210, 1.0
    %v213 = vmul.f32 %v211, 0.5
    %v214 = vmul.f32 %v212, 0.5
    %v215 = vsub.f32 %v205, %v46
    %v216 = vsub.f32 %v206, %v47
    %v217 = vmul.f32 %v213, %v215
    %v218 = vmul.f32 %v214, %v216
    %v219 = vadd.f32 %v46, %v217
    %v220 = vadd.f32 %v47, %v218
    %s221 = scalar_lea.vmem [#allocation5], 128
    %v222 = vld [vmem:[%s221] sm:$0xff]
    %v223 = vld [vmem:[%s221 + $0x8] sm:$0xff]
    %v224 = vld [vmem:[%s221 + $0x10] sm:$0xff]
    %v225 = vld [vmem:[%s221 + $0x18] sm:$0xff]
    %v226 = vld [vmem:[%s221 + $0x20] sm:$0xff]
    %v227 = vld [vmem:[%s221 + $0x28] sm:$0xff]
    %v228 = vld [vmem:[%s221 + $0x30] sm:$0xff]
    %v229 = vld [vmem:[%s221 + $0x38] sm:$0xff]
    %v230 = vld [vmem:[%s221 + $0x40] sm:$0xff]
    %v231 = vld [vmem:[%s221 + $0x48] sm:$0xff]
    %v232 = vld [vmem:[%s221 + $0x50] sm:$0xff]
    %v233 = vld [vmem:[%s221 + $0x58] sm:$0xff]
    %v234 = vld [vmem:[%s221 + $0x60] sm:$0xff]
    %v235 = vld [vmem:[%s221 + $0x68] sm:$0xff]
    %v236 = vld [vmem:[%s221 + $0x70] sm:$0xff]
    %v237 = vld [vmem:[%s221 + $0x78] sm:$0xff]
    %s238 = scalar_lea.vmem %s2, 2
    %v239 = vld [vmem:[%s238] sm:$0x3]
    %v240 = vpack.c.bf16 %v220, %v219
    %v242 = vlaneseq
    %v243 = vshrl.u32 %v242, 7
    %v244 = vsub.s32 0, %v243
    %v245 = vrot.slane %v239, %v244
    %v246 = vlaneseq
    %v247 = vshrl.u32 %v246, 7
    %v248 = vsub.s32 1, %v247
    %v249 = vrot.slane %v239, %v248
    %v268 = vunpack.c.l.b16 %v222
    %v269 = vunpack.c.h.b16 %v222
    %v270 = vunpack.c.l.b16 %v223
    %v271 = vunpack.c.h.b16 %v223
    %v272 = vunpack.c.l.b16 %v224
    %v273 = vunpack.c.h.b16 %v224
    %v274 = vunpack.c.l.b16 %v225
    %v275 = vunpack.c.h.b16 %v225
    %v276 = vunpack.c.l.b16 %v226
    %v277 = vunpack.c.h.b16 %v226
    %v278 = vunpack.c.l.b16 %v227
    %v279 = vunpack.c.h.b16 %v227
    %v280 = vunpack.c.l.b16 %v228
    %v281 = vunpack.c.h.b16 %v228
    %v282 = vunpack.c.l.b16 %v229
    %v283 = vunpack.c.h.b16 %v229
    %v284 = vunpack.c.l.b16 %v230
    %v285 = vunpack.c.h.b16 %v230
    %v286 = vunpack.c.l.b16 %v231
    %v287 = vunpack.c.h.b16 %v231
    %v288 = vunpack.c.l.b16 %v232
    %v289 = vunpack.c.h.b16 %v232
    %v290 = vunpack.c.l.b16 %v233
    %v291 = vunpack.c.h.b16 %v233
    %v292 = vunpack.c.l.b16 %v234
    %v293 = vunpack.c.h.b16 %v234
    %v294 = vunpack.c.l.b16 %v235
    %v295 = vunpack.c.h.b16 %v235
    %v296 = vunpack.c.l.b16 %v236
    %v297 = vunpack.c.h.b16 %v236
    %v298 = vunpack.c.l.b16 %v237
    %v299 = vunpack.c.h.b16 %v237
    %v300 = vpack.c.b16 %v270, %v268
    %v301 = vpack.c.b16 %v271, %v269
    %v302 = vpack.c.b16 %v274, %v272
    %v303 = vpack.c.b16 %v275, %v273
    %v304 = vpack.c.b16 %v278, %v276
    %v305 = vpack.c.b16 %v279, %v277
    %v306 = vpack.c.b16 %v282, %v280
    %v307 = vpack.c.b16 %v283, %v281
    %v308 = vpack.c.b16 %v286, %v284
    %v309 = vpack.c.b16 %v287, %v285
    %v310 = vpack.c.b16 %v290, %v288
    %v311 = vpack.c.b16 %v291, %v289
    %v312 = vpack.c.b16 %v294, %v292
    %v313 = vpack.c.b16 %v295, %v293
    %v314 = vpack.c.b16 %v298, %v296
    %v315 = vpack.c.b16 %v299, %v297
    %332 = vmatprep.subr.bf16.mxu0 %v301
    %333 = vmatpush1.bf16.msra.mxu0 %v300
    %334 = vmatprep.subr.bf16.mxu0 %v303
    %335 = vmatpush1.bf16.msra.mxu0 %v302
    %336 = vmatprep.subr.bf16.mxu0 %v305
    %337 = vmatpush1.bf16.msra.mxu0 %v304
    %338 = vmatprep.subr.bf16.mxu0 %v307
    %339 = vmatpush1.bf16.msra.mxu0 %v306
    %340 = vmatprep.subr.bf16.mxu0 %v309
    %341 = vmatpush1.bf16.msra.mxu0 %v308
    %342 = vmatprep.subr.bf16.mxu0 %v311
    %343 = vmatpush1.bf16.msra.mxu0 %v310
    %344 = vmatprep.subr.bf16.mxu0 %v313
    %345 = vmatpush1.bf16.msra.mxu0 %v312
    %346 = vmatprep.subr.bf16.mxu0 %v315
    %347 = vmatpush1.bf16.msra.mxu0 %v314
    %348 = vmatprep.subr.bf16.mxu0 0
    %349 = vmatpush1.bf16.msra.mxu0 0
    %350 = vmatprep.subr.bf16.mxu0 0
    %351 = vmatpush1.bf16.msra.mxu0 0
    %352 = vmatprep.subr.bf16.mxu0 0
    %353 = vmatpush1.bf16.msra.mxu0 0
    %354 = vmatprep.subr.bf16.mxu0 0
    %355 = vmatpush1.bf16.msra.mxu0 0
    %356 = vmatprep.subr.bf16.mxu0 0
    %357 = vmatpush1.bf16.msra.mxu0 0
    %358 = vmatprep.subr.bf16.mxu0 0
    %359 = vmatpush1.bf16.msra.mxu0 0
    %360 = vmatprep.subr.bf16.mxu0 0
    %361 = vmatpush1.bf16.msra.mxu0 0
    %362 = vmatprep.subr.bf16.mxu0 0
    %363 = vmatpush1.bf16.msra.mxu0 0
    %364 = vmatprep.mubr.bf16.mxu0 0
    %365 = vmatmul.mubr.bf16.gmra.mrb[0].mxu0 %v240
    %v366 = vpop.f32.mrb[0].mxu0
    %v367 = vadd.f32 %v245, %v366
    %v368 = vpop.f32.mrb[0].mxu0
    %v369 = vadd.f32 %v249, %v368
    %v370 = vpop.f32.mrb[0].mxu0
    %v371 = vadd.f32 %v245, %v370
    %v372 = vpop.f32.mrb[0].mxu0
    %v373 = vadd.f32 %v249, %v372
    %374 = vdwg.mxu0
    %v375 = vmax.f32 %v367, 0.0
    %v376 = vmax.f32 %v371, 0.0
    %v377 = vmul.f32 %v369, 0.5
    %v378 = vmul.f32 %v373, 0.5
    %v379 = vtanh.pop %v377
    %v380 = vtanh.pop %v378
    %v381 = vadd.f32 %v379, 1.0
    %v382 = vadd.f32 %v380, 1.0
    %v383 = vmul.f32 %v381, 0.5
    %v384 = vmul.f32 %v382, 0.5
    %v385 = vsub.f32 %v375, %v219
    %v386 = vsub.f32 %v376, %v220
    %v387 = vmul.f32 %v383, %v385
    %v388 = vmul.f32 %v384, %v386
    %v389 = vadd.f32 %v219, %v387
    %v390 = vadd.f32 %v220, %v388
    %391 = vst [vmem:[#allocation7] sm:$0xff] %v389
    %392 = vst [vmem:[#allocation7 + $0x8] sm:$0xff] %v390
    // Predicated region
    $region22: #{tpu_custom_call.1} parent=1 // pred_check
      _
    $region23: #{tpu_custom_call.1} parent=1 // pred_check_branch
      %394 = sbr.rel (0) target = $region25
    $region24: #{tpu_custom_call.1} parent=1 // pred_region
      %s396 = ssub.s32 256, 256
      %397 = vsyncadd [#allocation4], %s396
      %s398 = sshll.u32 [#allocation7], 4
      %s399 = int_to_ptr.vmem [resolvable:$true] %s398
      %404 = dma.vmem_to_hbm [thread:$0]  %s399, 256, %s3, [#allocation4], 128, 128, 8
    $region25: #{tpu_custom_call.1} parent=1 // pred_fallthru
      _
    // Predicated region
    $region26: #{tpu_custom_call.1} parent=1 // pred_check
      _
    $region27: #{tpu_custom_call.1} parent=1 // pred_check_branch
      %406 = sbr.rel (0) target = $region29
    $region28: #{tpu_custom_call.1} parent=1 // pred_region
      %407 = dma.done [#allocation4], 256
    $region29: #{tpu_custom_call.1} parent=1 // pred_fallthru
      _
    %408 = vsyncpa [#allocation3], 1
    %409 = vsyncpa [#allocation6], 1
    %410 = vsyncpa [#allocation4], 1

</llo_original>
